<compile_context>
chip_gen: v5e
topology: v5e:2x2
jax: 0.10.0
libtpu: 0.0.40
codegen_flags: <defaults>
</compile_context>

<pallas_src>
import functools

import numpy as np

import jax
import jax.numpy as jnp
from jax.experimental import pallas as pl
from jax.experimental.pallas import tpu as pltpu


# ----------------------------------------------------------------------------
# Host-side block-Toeplitz weight construction.
# ----------------------------------------------------------------------------
def _build_toeplitz(w_kkio, W, C, cin, cout, K, dilation, pad):
    """Fold kx shifts + channel mixing into K matrices of shape (W*C, W*C).

    T[ky][w_in*C + ci, w_out*C + co] = w[ky, kx, ci, co]
      where w_in = w_out + kx*dilation - pad (width padding is implicit: out
      of range w_in simply produces no entry, i.e. zeros).
    """
    WC = W * C
    T = np.zeros((K, WC, WC), np.float32)
    for ky in range(K):
        for kx in range(K):
            for w_out in range(W):
                w_in = w_out + kx * dilation - pad
                if 0 <= w_in < W:
                    T[ky,
                      w_in * C:w_in * C + cin,
                      w_out * C:w_out * C + cout] = w_kkio[ky, kx]
    return T


# ----------------------------------------------------------------------------
# Fused Pallas kernel: all layers for B_blk batch elements, VMEM resident.
# ----------------------------------------------------------------------------
def _fused_subm_kernel(x_ref, m_ref, w_ref, o_ref, buf_a, buf_b, *,
                       K, dilation, num_layers, H, WC, B_blk):
    """x_ref:  (B_blk, H, WC)      f32 scattered dense features (lane-dense)
       m_ref:  (B_blk, H, WC)      f32 active-site mask (lane-dense)
       w_ref:  (L, K, WC, WC)      bf16 block-Toeplitz weights
       o_ref:  (B_blk*H, WC)       f32 lane-dense output
       buf_a/buf_b: (B_blk, H+2p, WC) bf16 ping-pong halo scratch (VMEM)
    """
    pad = dilation * (K - 1) // 2
    Hp = H + 2 * pad

    # Zero only the halo rows; interiors are fully overwritten every layer.
    # (kx padding needs no halo at all -- it is baked into the Toeplitz zeros.)
    if pad > 0:
        zrows = jnp.zeros((B_blk, pad, WC), buf_a.dtype)
        buf_a[:, :pad, :] = zrows
        buf_a[:, Hp - pad:, :] = zrows
        if num_layers > 1:
            buf_b[:, :pad, :] = zrows
            buf_b[:, Hp - pad:, :] = zrows

    # Layer-0 input: single bf16 cast, placed into the interior rows.
    buf_a[:, pad:pad + H, :] = x_ref[...].astype(buf_a.dtype)

    # Hoist the lane-dense mask load out of the layer loop.
    mask = m_ref[...] if num_layers > 1 else None   # (B_blk, H, WC) f32

    bufs = (buf_a, buf_b)
    # TODO(synk): switch to lax.fori_loop over a slot-indexed scratch if
    # num_layers grows beyond a handful (keeps vreg live ranges bounded).
    for l in range(num_layers):
        src = bufs[l % 2]
        acc = None
        for ky in range(K):
            # Row-shifted slab (ky is the only remaining spatial shift).
            xin = src[:, ky * dilation:ky * dilation + H, :]    # bf16
            xin = xin.reshape(B_blk * H, WC)
            part = jnp.dot(xin, w_ref[l, ky],
                           preferred_element_type=jnp.float32)
            acc = part if acc is None else acc + part           # f32

        if l + 1 < num_layers:
            # Submanifold: keep inactive sites at zero for the next layer.
            nxt = acc.reshape(B_blk, H, WC) * mask
            bufs[(l + 1) % 2][:, pad:pad + H, :] = nxt.astype(buf_a.dtype)
        else:
            # Final layer: no mask needed (gather keeps only active sites);
            # store lane-dense (B_blk*H, W*C).
            o_ref[...] = acc.astype(o_ref.dtype)


def _tensorcores_per_chip():
    """2 TensorCores per chip on v7x, 1 on v5e/v6e (fallback: 1)."""
    try:
        kind = jax.devices()[0].device_kind.lower()
    except Exception:
        return 1
    return 2 if "v7" in kind else 1


def fused_subm_conv2d(dense, mask, toeplitz_w, *, K, dilation, num_layers):
    """Run all layers in one pallas_call. Returns lane-dense (B*H, W*C)."""
    B, H, WC = dense.shape
    pad = dilation * (K - 1) // 2
    Hp = H + 2 * pad
    L = toeplitz_w.shape[0]

    # Chip-aware batch split: one grid step per TensorCore on v7x, otherwise
    # fold the whole batch into a single step (grid is a serial loop on
    # single-TC chips; per-step overhead + tiny DMAs would be pure cost).
    cores = _tensorcores_per_chip()
    blocks = cores if (cores > 1 and B % cores == 0) else 1
    B_blk = B // blocks

    kern = functools.partial(_fused_subm_kernel, K=K, dilation=dilation,
                             num_layers=num_layers, H=H, WC=WC, B_blk=B_blk)

    out2d = pl.pallas_call(
        kern,
        out_shape=jax.ShapeDtypeStruct((B * H, WC), jnp.float32),
        grid_spec=pltpu.PrefetchScalarGridSpec(
            num_scalar_prefetch=0,
            grid=(blocks,),
            in_specs=[
                pl.BlockSpec((B_blk, H, WC), lambda i: (i, 0, 0)),
                pl.BlockSpec((B_blk, H, WC), lambda i: (i, 0, 0)),
                pl.BlockSpec((L, K, WC, WC), lambda i: (0, 0, 0, 0)),
            ],
            out_specs=pl.BlockSpec((B_blk * H, WC), lambda i: (i, 0)),
            scratch_shapes=[
                pltpu.VMEM((B_blk, Hp, WC), jnp.bfloat16),
                pltpu.VMEM((B_blk, Hp, WC), jnp.bfloat16),
            ],
        ),
        compiler_params=pltpu.CompilerParams(
            dimension_semantics=("parallel",),
            # Explicit budget (safe on v5e/v6e/v7x); current usage is ~0.3 MB.
            # TODO(synk): add an H-tiled grid axis with halo overlap before
            # scaling H/W/C toward the v7x 64 MiB VMEM limit.
            vmem_limit_bytes=32 * 1024 * 1024),
    )(dense, mask, toeplitz_w)
    return out2d


# ----------------------------------------------------------------------------
# Module wrapper (JAX/Pallas analog of SubMConv2dTestTorch, bias=False layers).
# ----------------------------------------------------------------------------
class SubMConv2dTestPallas:

    def __init__(self, num_layers, ndim, shape, in_channels, out_channels,
                 kernel_size, stride, padding, dilation, *, key):
        assert ndim == 2, "this test module is the 2D variant"
        assert stride == 1, "SubMConv2d preserves indices; stride must be 1"
        assert kernel_size % 2 == 1, "odd kernel required for center alignment"
        assert padding == dilation * (kernel_size - 1) // 2, (
            "SubMConv2d center-tap alignment requires "
            "padding == dilation*(kernel_size-1)//2")
        self.shape = tuple(shape)
        self.K = kernel_size
        self.dilation = dilation
        self.pad = padding
        self.num_layers = num_layers
        self.in_channels = in_channels
        self.out_channels = out_channels
        # Uniform channel count for the fused kernel (zero-padded channels and
        # weights contribute exactly zero).
        self.C = max(in_channels, out_channels)

        H, W = self.shape
        self.weights = []        # raw f32 (K, K, cin, cout) for the reference
        toep = []
        cin = in_channels
        keys = jax.random.split(key, num_layers)
        for i in range(num_layers):
            fan_in = cin * kernel_size * kernel_size
            w = jax.random.normal(
                keys[i], (kernel_size, kernel_size, cin, out_channels),
                jnp.float32) * (1.0 / fan_in) ** 0.5
            self.weights.append(w)
            toep.append(_build_toeplitz(np.asarray(w), W, self.C, cin,
                                        out_channels, kernel_size, dilation,
                                        self.pad))
            cin = out_channels
        # (L, K, W*C, W*C) block-Toeplitz weights, bf16 for the MXU
        # (f32 accumulation in-kernel).
        self.w_toep = jnp.asarray(np.stack(toep)).astype(jnp.bfloat16)

    def __call__(self, features, coors, batch_size):
        coors = coors.astype(jnp.int32)
        H, W = self.shape
        C = self.C
        b, y, x = coors[:, 0], coors[:, 1], coors[:, 2]

        # Scatter once (channel-padded), build the lane-dense mask once.
        # TODO(synk): fold the scatter/gather into the kernel via scalar-
        # prefetched coords in SMEM to remove these two XLA HBM passes.
        n = features.shape[0]
        feat_p = jnp.zeros((n, C), jnp.float32)
        feat_p = feat_p.at[:, :features.shape[-1]].set(
            features.astype(jnp.float32))
        dense = jnp.zeros((batch_size, H, W, C), jnp.float32)
        dense = dense.at[b, y, x].set(feat_p)
        dense = dense.reshape(batch_size, H, W * C)            # lane-dense
        mask = jnp.zeros((batch_size, H, W, 1), jnp.float32)
        mask = mask.at[b, y, x, 0].set(1.0)
        mask = jnp.broadcast_to(mask, (batch_size, H, W, C))
        mask = mask.reshape(batch_size, H, W * C)              # lane-dense

        out2d = fused_subm_conv2d(dense, mask, self.w_toep, K=self.K,
                                  dilation=self.dilation,
                                  num_layers=self.num_layers)

        # (B*H, W*C) -> (B, H, W, C) is a pure metadata reshape (row-major).
        out = out2d.reshape(batch_size, H, W, C)
        out_features = out[b, y, x][:, :self.out_channels]     # (N, Cout)
        return out_features, coors


# ----------------------------------------------------------------------------
# Pure-JAX reference (dense conv, same bf16/f32-accumulation policy).
# ----------------------------------------------------------------------------
def _reference(features, coors, batch_size, shape, weights, K, dilation):
    H, W = shape
    Cin = features.shape[-1]
    b, y, x = coors[:, 0], coors[:, 1], coors[:, 2]
    dense = jnp.zeros((batch_size, H, W, Cin), jnp.float32)
    dense = dense.at[b, y, x].set(features.astype(jnp.float32))
    mask = jnp.zeros((batch_size, H, W, 1), jnp.float32)
    mask = mask.at[b, y, x, 0].set(1.0)
    pad = dilation * (K - 1) // 2
    out = dense
    for i, w in enumerate(weights):
        out = jax.lax.conv_general_dilated(
            out.astype(jnp.bfloat16), w.astype(jnp.bfloat16),
            window_strides=(1, 1), padding=((pad, pad), (pad, pad)),
            rhs_dilation=(dilation, dilation),
            dimension_numbers=("NHWC", "HWIO", "NHWC"),
            preferred_element_type=jnp.float32)
        if i + 1 < len(weights):
            out = out * mask
    return out[b, y, x]


if __name__ == "__main__":
    # Small config consistent with the module's constructor arguments.
    num_layers = 2
    ndim = 2
    shape = (16, 16)
    in_channels = 4
    out_channels = 8
    kernel_size = 3
    stride = 1
    padding = 1
    dilation = 1
    batch_size = 2
    n_points = 48

    key = jax.random.PRNGKey(0)
    k_mod, k_idx, k_feat = jax.random.split(key, 3)

    # Deterministic sparse coordinates: unique sites over (B, H, W).
    H, W = shape
    flat = jax.random.choice(k_idx, batch_size * H * W, (n_points,),
                             replace=False)
    b = flat // (H * W)
    rem = flat % (H * W)
    y = rem // W
    x = rem % W
    coors = jnp.stack([b, y, x], axis=1).astype(jnp.int32)     # (N, 3)
    features = jax.random.normal(k_feat, (n_points, in_channels), jnp.float32)

    model = SubMConv2dTestPallas(num_layers, ndim, shape, in_channels,
                                 out_channels, kernel_size, stride, padding,
                                 dilation, key=k_mod)

    out_features, out_coors = model(features, coors, batch_size)
    out_features = jax.block_until_ready(out_features)

    # Sanity check against a pure-JAX dense-conv reference (same precision).
    ref = _reference(features, coors, batch_size, shape, model.weights,
                     kernel_size, dilation)
    assert out_features.shape == (n_points, out_channels)
    assert jnp.allclose(out_features, ref, rtol=5e-2, atol=5e-2), (
        float(jnp.max(jnp.abs(out_features - ref))))

    print("KERNEL_OK")
</pallas_src>

<mosaic_0001>
module attributes {stable_mosaic.version = 11 : i64} {
  func.func @_fused_subm_kernel(%arg0: i32, %arg1: memref<2x16x128xf32, #tpu.memory_space<vmem>>, %arg2: memref<2x16x128xf32, #tpu.memory_space<vmem>>, %arg3: memref<2x3x128x128xbf16, #tpu.memory_space<vmem>>, %arg4: memref<32x128xf32, #tpu.memory_space<vmem>>, %arg5: memref<2x18x128xbf16, #tpu.memory_space<vmem>>, %arg6: memref<2x18x128xbf16, #tpu.memory_space<vmem>>) attributes {dimension_semantics = [#tpu.dimension_semantics<parallel>], iteration_bounds = array<i64: 1>, scalar_prefetch = 0 : i64, scratch_operands = 2 : i64, tpu.core_type = #tpu.core_type<tc>, window_params = [{transform_indices = @transform_0, window_bounds = array<i64: 2, 16, 128>}, {transform_indices = @transform_1, window_bounds = array<i64: 2, 16, 128>}, {pipeline_mode = #tpu.pipeline_mode<synchronous>, transform_indices = @transform_2, window_bounds = array<i64: 2, 3, 128, 128>}, {transform_indices = @transform_3, window_bounds = array<i64: 32, 128>}]} {
    %cst = arith.constant 0.000000e+00 : bf16
    %0 = vector.broadcast %cst : bf16 to vector<2x1x128xbf16>
    %c0 = arith.constant 0 : index
    %c0_0 = arith.constant 0 : index
    %c0_1 = arith.constant 0 : index
    %1 = vector.load %arg5[%c0, %c0_0, %c0_1] : memref<2x18x128xbf16, #tpu.memory_space<vmem>>, vector<2x1x128xbf16>
    tpu.vector_store %arg5[%c0, %c0_0, %c0_1], %0 {strides = array<i32>} : memref<2x18x128xbf16, #tpu.memory_space<vmem>>, vector<2x1x128xbf16>,
    %c0_2 = arith.constant 0 : index
    %c17 = arith.constant 17 : index
    %c0_3 = arith.constant 0 : index
    %2 = vector.load %arg5[%c0_2, %c17, %c0_3] : memref<2x18x128xbf16, #tpu.memory_space<vmem>>, vector<2x1x128xbf16>
    tpu.vector_store %arg5[%c0_2, %c17, %c0_3], %0 {strides = array<i32>} : memref<2x18x128xbf16, #tpu.memory_space<vmem>>, vector<2x1x128xbf16>,
    %c0_4 = arith.constant 0 : index
    %c0_5 = arith.constant 0 : index
    %c0_6 = arith.constant 0 : index
    %3 = vector.load %arg6[%c0_4, %c0_5, %c0_6] : memref<2x18x128xbf16, #tpu.memory_space<vmem>>, vector<2x1x128xbf16>
    tpu.vector_store %arg6[%c0_4, %c0_5, %c0_6], %0 {strides = array<i32>} : memref<2x18x128xbf16, #tpu.memory_space<vmem>>, vector<2x1x128xbf16>,
    %c0_7 = arith.constant 0 : index
    %c17_8 = arith.constant 17 : index
    %c0_9 = arith.constant 0 : index
    %4 = vector.load %arg6[%c0_7, %c17_8, %c0_9] : memref<2x18x128xbf16, #tpu.memory_space<vmem>>, vector<2x1x128xbf16>
    tpu.vector_store %arg6[%c0_7, %c17_8, %c0_9], %0 {strides = array<i32>} : memref<2x18x128xbf16, #tpu.memory_space<vmem>>, vector<2x1x128xbf16>,
    %c0_10 = arith.constant 0 : index
    %c0_11 = arith.constant 0 : index
    %c0_12 = arith.constant 0 : index
    %5 = vector.load %arg1[%c0_10, %c0_11, %c0_12] : memref<2x16x128xf32, #tpu.memory_space<vmem>>, vector<2x16x128xf32>
    %6 = arith.truncf %5 : vector<2x16x128xf32> to vector<2x16x128xbf16>
    %c0_13 = arith.constant 0 : index
    %c1 = arith.constant 1 : index
    %c0_14 = arith.constant 0 : index
    %7 = vector.load %arg5[%c0_13, %c1, %c0_14] : memref<2x18x128xbf16, #tpu.memory_space<vmem>>, vector<2x16x128xbf16>
    tpu.vector_store %arg5[%c0_13, %c1, %c0_14], %6 {strides = array<i32>} : memref<2x18x128xbf16, #tpu.memory_space<vmem>>, vector<2x16x128xbf16>,
    %c0_15 = arith.constant 0 : index
    %c0_16 = arith.constant 0 : index
    %c0_17 = arith.constant 0 : index
    %8 = vector.load %arg2[%c0_15, %c0_16, %c0_17] : memref<2x16x128xf32, #tpu.memory_space<vmem>>, vector<2x16x128xf32>
    %c0_18 = arith.constant 0 : index
    %c0_19 = arith.constant 0 : index
    %c0_20 = arith.constant 0 : index
    %9 = vector.load %arg5[%c0_18, %c0_19, %c0_20] : memref<2x18x128xbf16, #tpu.memory_space<vmem>>, vector<2x16x128xbf16>
    %10 = vector.shape_cast %9 : vector<2x16x128xbf16> to vector<32x128xbf16>
    %c0_21 = arith.constant 0 : index
    %c0_22 = arith.constant 0 : index
    %c0_23 = arith.constant 0 : index
    %c0_24 = arith.constant 0 : index
    %11 = vector.load %arg3[%c0_21, %c0_22, %c0_23, %c0_24] : memref<2x3x128x128xbf16, #tpu.memory_space<vmem>>, vector<1x1x128x128xbf16>
    %12 = vector.shape_cast %11 : vector<1x1x128x128xbf16> to vector<128x128xbf16>
    %cst_25 = arith.constant dense<0.000000e+00> : vector<32x128xf32>
    %13 = tpu.matmul %10, %12, %cst_25 {dimension_numbers = #tpu.dot_dimension_numbers<[1], [0], [0], [1], [0, 0, 1, 1], [], []>} : vector<32x128xbf16>, vector<128x128xbf16>, vector<32x128xf32> -> vector<32x128xf32>
    %c0_26 = arith.constant 0 : index
    %c1_27 = arith.constant 1 : index
    %c0_28 = arith.constant 0 : index
    %14 = vector.load %arg5[%c0_26, %c1_27, %c0_28] : memref<2x18x128xbf16, #tpu.memory_space<vmem>>, vector<2x16x128xbf16>
    %15 = vector.shape_cast %14 : vector<2x16x128xbf16> to vector<32x128xbf16>
    %c0_29 = arith.constant 0 : index
    %c1_30 = arith.constant 1 : index
    %c0_31 = arith.constant 0 : index
    %c0_32 = arith.constant 0 : index
    %16 = vector.load %arg3[%c0_29, %c1_30, %c0_31, %c0_32] : memref<2x3x128x128xbf16, #tpu.memory_space<vmem>>, vector<1x1x128x128xbf16>
    %17 = vector.shape_cast %16 : vector<1x1x128x128xbf16> to vector<128x128xbf16>
    %cst_33 = arith.constant dense<0.000000e+00> : vector<32x128xf32>
    %18 = tpu.matmul %15, %17, %cst_33 {dimension_numbers = #tpu.dot_dimension_numbers<[1], [0], [0], [1], [0, 0, 1, 1], [], []>} : vector<32x128xbf16>, vector<128x128xbf16>, vector<32x128xf32> -> vector<32x128xf32>
    %19 = arith.addf %13, %18 : vector<32x128xf32>
    %c0_34 = arith.constant 0 : index
    %c2 = arith.constant 2 : index
    %c0_35 = arith.constant 0 : index
    %20 = vector.load %arg5[%c0_34, %c2, %c0_35] : memref<2x18x128xbf16, #tpu.memory_space<vmem>>, vector<2x16x128xbf16>
    %21 = vector.shape_cast %20 : vector<2x16x128xbf16> to vector<32x128xbf16>
    %c0_36 = arith.constant 0 : index
    %c2_37 = arith.constant 2 : index
    %c0_38 = arith.constant 0 : index
    %c0_39 = arith.constant 0 : index
    %22 = vector.load %arg3[%c0_36, %c2_37, %c0_38, %c0_39] : memref<2x3x128x128xbf16, #tpu.memory_space<vmem>>, vector<1x1x128x128xbf16>
    %23 = vector.shape_cast %22 : vector<1x1x128x128xbf16> to vector<128x128xbf16>
    %cst_40 = arith.constant dense<0.000000e+00> : vector<32x128xf32>
    %24 = tpu.matmul %21, %23, %cst_40 {dimension_numbers = #tpu.dot_dimension_numbers<[1], [0], [0], [1], [0, 0, 1, 1], [], []>} : vector<32x128xbf16>, vector<128x128xbf16>, vector<32x128xf32> -> vector<32x128xf32>
    %25 = arith.addf %19, %24 : vector<32x128xf32>
    %26 = vector.shape_cast %25 : vector<32x128xf32> to vector<2x16x128xf32>
    %27 = arith.mulf %26, %8 : vector<2x16x128xf32>
    %28 = arith.truncf %27 : vector<2x16x128xf32> to vector<2x16x128xbf16>
    %c0_41 = arith.constant 0 : index
    %c1_42 = arith.constant 1 : index
    %c0_43 = arith.constant 0 : index
    %29 = vector.load %arg6[%c0_41, %c1_42, %c0_43] : memref<2x18x128xbf16, #tpu.memory_space<vmem>>, vector<2x16x128xbf16>
    tpu.vector_store %arg6[%c0_41, %c1_42, %c0_43], %28 {strides = array<i32>} : memref<2x18x128xbf16, #tpu.memory_space<vmem>>, vector<2x16x128xbf16>,
    %c0_44 = arith.constant 0 : index
    %c0_45 = arith.constant 0 : index
    %c0_46 = arith.constant 0 : index
    %30 = vector.load %arg6[%c0_44, %c0_45, %c0_46] : memref<2x18x128xbf16, #tpu.memory_space<vmem>>, vector<2x16x128xbf16>
    %31 = vector.shape_cast %30 : vector<2x16x128xbf16> to vector<32x128xbf16>
    %c1_47 = arith.constant 1 : index
    %c0_48 = arith.constant 0 : index
    %c0_49 = arith.constant 0 : index
    %c0_50 = arith.constant 0 : index
    %32 = vector.load %arg3[%c1_47, %c0_48, %c0_49, %c0_50] : memref<2x3x128x128xbf16, #tpu.memory_space<vmem>>, vector<1x1x128x128xbf16>
    %33 = vector.shape_cast %32 : vector<1x1x128x128xbf16> to vector<128x128xbf16>
    %cst_51 = arith.constant dense<0.000000e+00> : vector<32x128xf32>
    %34 = tpu.matmul %31, %33, %cst_51 {dimension_numbers = #tpu.dot_dimension_numbers<[1], [0], [0], [1], [0, 0, 1, 1], [], []>} : vector<32x128xbf16>, vector<128x128xbf16>, vector<32x128xf32> -> vector<32x128xf32>
    %c0_52 = arith.constant 0 : index
    %c1_53 = arith.constant 1 : index
    %c0_54 = arith.constant 0 : index
    %35 = vector.load %arg6[%c0_52, %c1_53, %c0_54] : memref<2x18x128xbf16, #tpu.memory_space<vmem>>, vector<2x16x128xbf16>
    %36 = vector.shape_cast %35 : vector<2x16x128xbf16> to vector<32x128xbf16>
    %c1_55 = arith.constant 1 : index
    %c1_56 = arith.constant 1 : index
    %c0_57 = arith.constant 0 : index
    %c0_58 = arith.constant 0 : index
    %37 = vector.load %arg3[%c1_55, %c1_56, %c0_57, %c0_58] : memref<2x3x128x128xbf16, #tpu.memory_space<vmem>>, vector<1x1x128x128xbf16>
    %38 = vector.shape_cast %37 : vector<1x1x128x128xbf16> to vector<128x128xbf16>
    %cst_59 = arith.constant dense<0.000000e+00> : vector<32x128xf32>
    %39 = tpu.matmul %36, %38, %cst_59 {dimension_numbers = #tpu.dot_dimension_numbers<[1], [0], [0], [1], [0, 0, 1, 1], [], []>} : vector<32x128xbf16>, vector<128x128xbf16>, vector<32x128xf32> -> vector<32x128xf32>
    %40 = arith.addf %34, %39 : vector<32x128xf32>
    %c0_60 = arith.constant 0 : index
    %c2_61 = arith.constant 2 : index
    %c0_62 = arith.constant 0 : index
    %41 = vector.load %arg6[%c0_60, %c2_61, %c0_62] : memref<2x18x128xbf16, #tpu.memory_space<vmem>>, vector<2x16x128xbf16>
    %42 = vector.shape_cast %41 : vector<2x16x128xbf16> to vector<32x128xbf16>
    %c1_63 = arith.constant 1 : index
    %c2_64 = arith.constant 2 : index
    %c0_65 = arith.constant 0 : index
    %c0_66 = arith.constant 0 : index
    %43 = vector.load %arg3[%c1_63, %c2_64, %c0_65, %c0_66] : memref<2x3x128x128xbf16, #tpu.memory_space<vmem>>, vector<1x1x128x128xbf16>
    %44 = vector.shape_cast %43 : vector<1x1x128x128xbf16> to vector<128x128xbf16>
    %cst_67 = arith.constant dense<0.000000e+00> : vector<32x128xf32>
    %45 = tpu.matmul %42, %44, %cst_67 {dimension_numbers = #tpu.dot_dimension_numbers<[1], [0], [0], [1], [0, 0, 1, 1], [], []>} : vector<32x128xbf16>, vector<128x128xbf16>, vector<32x128xf32> -> vector<32x128xf32>
    %46 = arith.addf %40, %45 : vector<32x128xf32>
    %c0_68 = arith.constant 0 : index
    %c0_69 = arith.constant 0 : index
    %47 = vector.load %arg4[%c0_68, %c0_69] : memref<32x128xf32, #tpu.memory_space<vmem>>, vector<32x128xf32>
    tpu.vector_store %arg4[%c0_68, %c0_69], %46 {strides = array<i32>} : memref<32x128xf32, #tpu.memory_space<vmem>>, vector<32x128xf32>,
    return
  }
  func.func @transform_0(%arg0: i32) -> (i32, i32, i32) {
    %c0_i32 = arith.constant 0 : i32
    %c0_i32_0 = arith.constant 0 : i32
    %c0_i32_1 = arith.constant 0 : i32
    return %arg0, %c0_i32, %c0_i32_0 : i32, i32, i32
  }
  func.func @transform_1(%arg0: i32) -> (i32, i32, i32) {
    %c0_i32 = arith.constant 0 : i32
    %c0_i32_0 = arith.constant 0 : i32
    %c0_i32_1 = arith.constant 0 : i32
    return %arg0, %c0_i32, %c0_i32_0 : i32, i32, i32
  }
  func.func @transform_2(%arg0: i32) -> (i32, i32, i32, i32) {
    %c0_i32 = arith.constant 0 : i32
    %c0_i32_0 = arith.constant 0 : i32
    %c0_i32_1 = arith.constant 0 : i32
    %c0_i32_2 = arith.constant 0 : i32
    %c0_i32_3 = arith.constant 0 : i32
    return %c0_i32, %c0_i32_0, %c0_i32_1, %c0_i32_2 : i32, i32, i32, i32
  }
  func.func @transform_3(%arg0: i32) -> (i32, i32) {
    %c0_i32 = arith.constant 0 : i32
    %c0_i32_0 = arith.constant 0 : i32
    return %arg0, %c0_i32 : i32, i32
  }
}

</mosaic_0001>

<llo_original>
// kernel: tpu_custom_call.1
$region0: #{tpu_custom_call.1}
  #allocation0 [shape = 'u32[]', space=smem, size = 0x4, offset = 0x4, fixed_abs, tag = 'smem constant byte address 0x4 - core index']
  #allocation1 [shape = 'u32[72,128]{1,0:T(1,128)}', space=vmem, size = 0x9000, scoped, tag = 'internal scratch']
  #allocation2 [shape = 'bf16[2,18,128]{2,1,0:T(8,128)(2,1)}', space=vmem, size = 0x3000, scoped, tag = 'scratch operand']
  #allocation3 [shape = 'bf16[2,18,128]{2,1,0:T(8,128)(2,1)}', space=vmem, size = 0x3000, scoped, tag = 'scratch operand']
  %s0 = inlined_call_operand.hbm [shape: f32[2,16,128], index: 0, kind: input, shape index: {}]
  %s1 = inlined_call_operand.hbm [shape: f32[2,16,128], index: 1, kind: input, shape index: {}]
  %s2 = inlined_call_operand.hbm [shape: bf16[2,3,128,128], index: 2, kind: input, shape index: {}]
  %s3 = inlined_call_operand.hbm [shape: f32[32,128], index: 3, kind: output, shape index: {}]
  %s4 = sld [smem:[#allocation0]]
  $region34: #{tpu_custom_call.1} parent=0
    _
  %s6 = ssub.s32 1, %s4
  %s7 = scalar_select 0, %s6, %s4
  $region1: #{tpu_custom_call.1} parent=0
    #allocation4 [shape = 'u8[16384]{0}', space=vmem, size = 0x4000, scoped, tag = 'input window, operand 0, single buffered']
    #allocation5 [shape = 's32[1]{0}', space=sflag, size = 0x4, scoped, tag = 'scoped memory for tpu_custom_call.1']
    #allocation6 [shape = 's32[1]{0}', space=sflag, size = 0x4, scoped, tag = 'scoped memory for tpu_custom_call.1']
    #allocation7 [shape = 'u8[16384]{0}', space=vmem, size = 0x4000, scoped, tag = 'input window, operand 1, single buffered']
    #allocation8 [shape = 's32[1]{0}', space=sflag, size = 0x4, scoped, tag = 'scoped memory for tpu_custom_call.1']
    #allocation9 [shape = 'u8[196608]{0}', space=vmem, size = 0x30000, scoped, tag = 'input window, operand 2, single buffered']
    #allocation10 [shape = 'u8[16384]{0}', space=vmem, size = 0x4000, scoped, tag = 'output window, operand 0, single buffered']
    %8 = vsyncpa [#allocation5], 0
    %9 = vsyncpa [#allocation8], 0
    %10 = vsyncpa [#allocation6], 0
    // Predicated region
    $region2: #{tpu_custom_call.1} parent=1 // pred_check
      _
    $region3: #{tpu_custom_call.1} parent=1 // pred_check_branch
      %12 = sbr.rel (0) target = $region5
    $region4: #{tpu_custom_call.1} parent=1 // pred_region
      %14 = vsyncadd [#allocation5], 0
      %s15 = sshll.u32 %s0, 4
      %s16 = int_to_ptr.hbm [resolvable:$true] %s15
      %s17 = sshll.u32 [#allocation4], 4
      %s18 = int_to_ptr.vmem [resolvable:$true] %s17
      %23 = dma.hbm_to_vmem [thread:$0]  %s16, 512, %s18, [#allocation5], 128, 128, 8
    $region5: #{tpu_custom_call.1} parent=1 // pred_fallthru
      _
    // Predicated region
    $region6: #{tpu_custom_call.1} parent=1 // pred_check
      _
    $region7: #{tpu_custom_call.1} parent=1 // pred_check_branch
      %25 = sbr.rel (0) target = $region9
    $region8: #{tpu_custom_call.1} parent=1 // pred_region
      %27 = vsyncadd [#allocation8], 0
      %s28 = sshll.u32 %s1, 4
      %s29 = int_to_ptr.hbm [resolvable:$true] %s28
      %s30 = sshll.u32 [#allocation7], 4
      %s31 = int_to_ptr.vmem [resolvable:$true] %s30
      %36 = dma.hbm_to_vmem [thread:$0]  %s29, 512, %s31, [#allocation8], 128, 128, 8
    $region9: #{tpu_custom_call.1} parent=1 // pred_fallthru
      _
    // Predicated region
    $region10: #{tpu_custom_call.1} parent=1 // pred_check
      _
    $region11: #{tpu_custom_call.1} parent=1 // pred_check_branch
      %38 = sbr.rel (0) target = $region13
    $region12: #{tpu_custom_call.1} parent=1 // pred_region
      %40 = vsyncadd [#allocation8], 0
      %s41 = sshll.u32 %s2, 4
      %s42 = int_to_ptr.hbm [resolvable:$true] %s41
      %s43 = sshll.u32 [#allocation9], 4
      %s44 = int_to_ptr.vmem [resolvable:$true] %s43
      %49 = dma.hbm_to_vmem [thread:$0]  %s42, 6144, %s44, [#allocation8], 64, 64, 4
    $region13: #{tpu_custom_call.1} parent=1 // pred_fallthru
      _
    // Predicated region
    $region14: #{tpu_custom_call.1} parent=1 // pred_check
      _
    $region15: #{tpu_custom_call.1} parent=1 // pred_check_branch
      %51 = sbr.rel (0) target = $region17
    $region16: #{tpu_custom_call.1} parent=1 // pred_region
      %53 = dma.done [#allocation5], 512
    $region17: #{tpu_custom_call.1} parent=1 // pred_fallthru
      _
    // Predicated region
    $region18: #{tpu_custom_call.1} parent=1 // pred_check
      _
    $region19: #{tpu_custom_call.1} parent=1 // pred_check_branch
      %55 = sbr.rel (0) target = $region21
    $region20: #{tpu_custom_call.1} parent=1 // pred_region
      %57 = dma.done [#allocation8], 512
    $region21: #{tpu_custom_call.1} parent=1 // pred_fallthru
      _
    // Predicated region
    $region22: #{tpu_custom_call.1} parent=1 // pred_check
      _
    $region23: #{tpu_custom_call.1} parent=1 // pred_check_branch
      %59 = sbr.rel (0) target = $region25
    $region24: #{tpu_custom_call.1} parent=1 // pred_region
      %61 = dma.done [#allocation8], 6144
    $region25: #{tpu_custom_call.1} parent=1 // pred_fallthru
      _
    %vm63 = vcmask 1040384
    %vm64 = vsmask.f32 256
    %vm65 = vmand %vm63, %vm64
    %v66 = vld [vmem:[#allocation2] sm:$0x1]
    %v67 = vsel %vm65, 0, %v66
    %68 = vst [vmem:[#allocation2] sm:$0x1] %v67
    %v69 = vld [vmem:[#allocation2 + $0xc] sm:$0x1]
    %v70 = vsel %vm65, 0, %v69
    %71 = vst [vmem:[#allocation2 + $0xc] sm:$0x1] %v70
    %vm72 = vsmask.f32 7938
    %vm73 = vmand %vm63, %vm72
    %v74 = vld [vmem:[#allocation2 + $0x8] sm:$0x1]
    %v75 = vsel %vm73, 0, %v74
    %76 = vst [vmem:[#allocation2 + $0x8] sm:$0x1] %v75
    %v77 = vld [vmem:[#allocation2 + $0x14] sm:$0x1]
    %v78 = vsel %vm73, 0, %v77
    %79 = vst [vmem:[#allocation2 + $0x14] sm:$0x1] %v78
    %v80 = vld [vmem:[#allocation3] sm:$0x1]
    %v81 = vsel %vm65, 0, %v80
    %82 = vst [vmem:[#allocation3] sm:$0x1] %v81
    %v83 = vld [vmem:[#allocation3 + $0xc] sm:$0x1]
    %v84 = vsel %vm65, 0, %v83
    %85 = vst [vmem:[#allocation3 + $0xc] sm:$0x1] %v84
    %v86 = vld [vmem:[#allocation3 + $0x8] sm:$0x1]
    %v87 = vsel %vm73, 0, %v86
    %88 = vst [vmem:[#allocation3 + $0x8] sm:$0x1] %v87
    %v89 = vld [vmem:[#allocation3 + $0x14] sm:$0x1]
    %v90 = vsel %vm73, 0, %v89
    %91 = vst [vmem:[#allocation3 + $0x14] sm:$0x1] %v90
    %v92 = vld [vmem:[#allocation4] sm:$0xff]
    %v93 = vld [vmem:[#allocation4 + $0x8] sm:$0xff]
    %v94 = vld [vmem:[#allocation4 + $0x10] sm:$0xff]
    %v95 = vld [vmem:[#allocation4 + $0x18] sm:$0xff]
    %v96 = vpack.c.bf16 %v92, %v92
    %v97 = vpack.c.bf16 %v93, %v93
    %v98 = vpack.c.bf16 %v94, %v94
    %v99 = vpack.c.bf16 %v95, %v95
    %vm100 = vsmask.f32 4368
    %vm101 = vmor %vm64, %vm100
    %v103 = vshrl.u32 %v96, 16
    %v105 = vrot.slane %v103, 7
    %v106 = vshll.u32 %v96, 16
    %v108 = vor.u32 %v105, %v106
    %v109 = vrot.slane %v105, 4
    %v111 = vshrl.u32 %v97, 16
    %v113 = vrot.slane %v111, 7
    %v114 = vshll.u32 %v97, 16
    %v116 = vor.u32 %v113, %v114
    %v117 = vsel %vm101, %v109, %v116
    %v118 = vrot.slane %v113, 4
    %v120 = vshrl.u32 %v98, 16
    %v122 = vrot.slane %v120, 7
    %v123 = vshll.u32 %v98, 16
    %v125 = vor.u32 %v122, %v123
    %v126 = vrot.slane %v122, 4
    %v128 = vshrl.u32 %v99, 16
    %v130 = vrot.slane %v128, 7
    %v131 = vshll.u32 %v99, 16
    %v133 = vor.u32 %v130, %v131
    %v134 = vsel %vm101, %v126, %v133
    %v135 = vrot.slane %v130, 4
    %vm142 = vcmask 1043456
    %vm143 = vmand %vm142, %vm72
    %v144 = vld [vmem:[#allocation2] sm:$0xf]
    %v145 = vsel %vm143, %v108, %v144
    %146 = vst [vmem:[#allocation2] sm:$0xf] %v145
    %147 = vst [vmem:[#allocation2 + $0x4] sm:$0xf] %v117
    %v148 = vld [vmem:[#allocation2 + $0x8] sm:$0x1]
    %v149 = vsel %vm65, %v118, %v148
    %150 = vst [vmem:[#allocation2 + $0x8] sm:$0x1] %v149
    %v151 = vld [vmem:[#allocation2 + $0xc] sm:$0xf]
    %v152 = vsel %vm143, %v125, %v151
    %153 = vst [vmem:[#allocation2 + $0xc] sm:$0xf] %v152
    %154 = vst [vmem:[#allocation2 + $0x10] sm:$0xf] %v134
    %v155 = vld [vmem:[#allocation2 + $0x14] sm:$0x1]
    %v156 = vsel %vm65, %v135, %v155
    %157 = vst [vmem:[#allocation2 + $0x14] sm:$0x1] %v156
    %v158 = vld [vmem:[#allocation7] sm:$0xff]
    %v159 = vld [vmem:[#allocation7 + $0x8] sm:$0xff]
    %v160 = vld [vmem:[#allocation7 + $0x10] sm:$0xff]
    %v161 = vld [vmem:[#allocation7 + $0x18] sm:$0xff]
    %v162 = vld [vmem:[#allocation2] sm:$0xf]
    %v163 = vld [vmem:[#allocation2 + $0x4] sm:$0xf]
    %v164 = vld [vmem:[#allocation2 + $0xc] sm:$0xf]
    %v165 = vld [vmem:[#allocation2 + $0x10] sm:$0xf]
    %v166 = vld [vmem:[#allocation9] sm:$0xf]
    %v167 = vld [vmem:[#allocation9 + $0x4] sm:$0xf]
    %v168 = vld [vmem:[#allocation9 + $0x8] sm:$0xf]
    %v169 = vld [vmem:[#allocation9 + $0xc] sm:$0xf]
    %v170 = vld [vmem:[#allocation9 + $0x10] sm:$0xf]
    %v171 = vld [vmem:[#allocation9 + $0x14] sm:$0xf]
    %v172 = vld [vmem:[#allocation9 + $0x18] sm:$0xf]
    %v173 = vld [vmem:[#allocation9 + $0x1c] sm:$0xf]
    %v174 = vld [vmem:[#allocation9 + $0x20] sm:$0xf]
    %v175 = vld [vmem:[#allocation9 + $0x24] sm:$0xf]
    %v176 = vld [vmem:[#allocation9 + $0x28] sm:$0xf]
    %v177 = vld [vmem:[#allocation9 + $0x2c] sm:$0xf]
    %v178 = vld [vmem:[#allocation9 + $0x30] sm:$0xf]
    %v179 = vld [vmem:[#allocation9 + $0x34] sm:$0xf]
    %v180 = vld [vmem:[#allocation9 + $0x38] sm:$0xf]
    %v181 = vld [vmem:[#allocation9 + $0x3c] sm:$0xf]
    %v182 = vld [vmem:[#allocation2 + $0x8] sm:$0x1]
    %v183 = vld [vmem:[#allocation2 + $0x14] sm:$0x1]
    %vm184 = vsmask.f32 3328
    %vm185 = vsmask.f32 7440
    %vm186 = vmor %vm184, %vm185
    %v188 = vshrl.u32 %v162, 16
    %v190 = vrot.slane %v188, 4
    %v191 = vshll.u32 %v162, 16
    %v193 = vrot.slane %v191, 5
    %v194 = vor.u32 %v190, %v193
    %v195 = vrot.slane %v194, 4
    %v197 = vshll.u32 %v163, 16
    %v199 = vrot.slane %v197, 5
    %v200 = vsel %vm186, %v195, %v199
    %v201 = vshrl.u32 %v163, 16
    %v203 = vrot.slane %v201, 4
    %v204 = vor.u32 %v203, %v199
    %v205 = vrot.slane %v204, 4
    %v207 = vshll.u32 %v182, 16
    %v209 = vrot.slane %v207, 5
    %v210 = vsel %vm186, %v205, %v209
    %v212 = vshrl.u32 %v164, 16
    %v214 = vrot.slane %v212, 4
    %v215 = vshll.u32 %v164, 16
    %v217 = vrot.slane %v215, 5
    %v218 = vor.u32 %v214, %v217
    %v219 = vrot.slane %v218, 4
    %v221 = vshll.u32 %v165, 16
    %v223 = vrot.slane %v221, 5
    %v224 = vsel %vm186, %v219, %v223
    %v225 = vshrl.u32 %v165, 16
    %v227 = vrot.slane %v225, 4
    %v228 = vor.u32 %v227, %v223
    %v229 = vrot.slane %v228, 4
    %v231 = vshll.u32 %v183, 16
    %v233 = vrot.slane %v231, 5
    %v234 = vsel %vm186, %v229, %v233
    %s235 = scalar_lea.vmem [#allocation9], 64
    %v236 = vld [vmem:[%s235] sm:$0xf]
    %v237 = vld [vmem:[%s235 + $0x4] sm:$0xf]
    %v238 = vld [vmem:[%s235 + $0x8] sm:$0xf]
    %v239 = vld [vmem:[%s235 + $0xc] sm:$0xf]
    %v240 = vld [vmem:[%s235 + $0x10] sm:$0xf]
    %v241 = vld [vmem:[%s235 + $0x14] sm:$0xf]
    %v242 = vld [vmem:[%s235 + $0x18] sm:$0xf]
    %v243 = vld [vmem:[%s235 + $0x1c] sm:$0xf]
    %v244 = vld [vmem:[%s235 + $0x20] sm:$0xf]
    %v245 = vld [vmem:[%s235 + $0x24] sm:$0xf]
    %v246 = vld [vmem:[%s235 + $0x28] sm:$0xf]
    %v247 = vld [vmem:[%s235 + $0x2c] sm:$0xf]
    %v248 = vld [vmem:[%s235 + $0x30] sm:$0xf]
    %v249 = vld [vmem:[%s235 + $0x34] sm:$0xf]
    %v250 = vld [vmem:[%s235 + $0x38] sm:$0xf]
    %v251 = vld [vmem:[%s235 + $0x3c] sm:$0xf]
    %v252 = vunpack.c.l.b16 %v200
    %v253 = vunpack.c.l.b16 %v210
    %v254 = vunpack.c.l.b16 %v224
    %v255 = vunpack.c.l.b16 %v234
    %v256 = vpack.c.b16 %v253, %v252
    %v257 = vpack.c.b16 %v255, %v254
    %v276 = vunpack.c.l.b16 %v236
    %v277 = vunpack.c.l.b16 %v237
    %v278 = vunpack.c.l.b16 %v238
    %v279 = vunpack.c.l.b16 %v239
    %v280 = vunpack.c.l.b16 %v240
    %v281 = vunpack.c.l.b16 %v241
    %v282 = vunpack.c.l.b16 %v242
    %v283 = vunpack.c.l.b16 %v243
    %v284 = vunpack.c.l.b16 %v244
    %v285 = vunpack.c.l.b16 %v245
    %v286 = vunpack.c.l.b16 %v246
    %v287 = vunpack.c.l.b16 %v247
    %v288 = vunpack.c.l.b16 %v248
    %v289 = vunpack.c.l.b16 %v249
    %v290 = vunpack.c.l.b16 %v250
    %v291 = vunpack.c.l.b16 %v251
    %v292 = vpack.c.b16 %v277, %v276
    %v293 = vpack.c.b16 %v279, %v278
    %v294 = vpack.c.b16 %v281, %v280
    %v295 = vpack.c.b16 %v283, %v282
    %v296 = vpack.c.b16 %v285, %v284
    %v297 = vpack.c.b16 %v287, %v286
    %v298 = vpack.c.b16 %v289, %v288
    %v299 = vpack.c.b16 %v291, %v290
    %308 = vmatpush.bf16.msra.mxu0 %v299
    %309 = vmatpush.bf16.msra.mxu0 %v298
    %310 = vmatpush.bf16.msra.mxu0 %v297
    %311 = vmatpush.bf16.msra.mxu0 %v296
    %312 = vmatpush.bf16.msra.mxu0 %v295
    %313 = vmatpush.bf16.msra.mxu0 %v294
    %314 = vmatpush.bf16.msra.mxu0 %v293
    %315 = vmatpush.bf16.msra.mxu0 %v292
    %316 = vmatmul.bf16.gmra.mxu0 %v256
    %v317 = vpop.f32.mrf.mxu0
    %v318 = vadd.f32 0.0, %v317
    %v319 = vpop.f32.mrf.mxu0
    %v320 = vadd.f32 0.0, %v319
    %321 = vmatmul.bf16.gmra.mxu0 %v257
    %v322 = vpop.f32.mrf.mxu0
    %v323 = vadd.f32 0.0, %v322
    %v324 = vpop.f32.mrf.mxu0
    %v325 = vadd.f32 0.0, %v324
    %326 = vdwg.mxu0
    %v331 = vunpack.c.l.b16 %v162
    %v332 = vunpack.c.l.b16 %v163
    %v333 = vunpack.c.l.b16 %v164
    %v334 = vunpack.c.l.b16 %v165
    %v335 = vpack.c.b16 %v332, %v331
    %v336 = vpack.c.b16 %v334, %v333
    %v355 = vunpack.c.l.b16 %v166
    %v356 = vunpack.c.l.b16 %v167
    %v357 = vunpack.c.l.b16 %v168
    %v358 = vunpack.c.l.b16 %v169
    %v359 = vunpack.c.l.b16 %v170
    %v360 = vunpack.c.l.b16 %v171
    %v361 = vunpack.c.l.b16 %v172
    %v362 = vunpack.c.l.b16 %v173
    %v363 = vunpack.c.l.b16 %v174
    %v364 = vunpack.c.l.b16 %v175
    %v365 = vunpack.c.l.b16 %v176
    %v366 = vunpack.c.l.b16 %v177
    %v367 = vunpack.c.l.b16 %v178
    %v368 = vunpack.c.l.b16 %v179
    %v369 = vunpack.c.l.b16 %v180
    %v370 = vunpack.c.l.b16 %v181
    %v371 = vpack.c.b16 %v356, %v355
    %v372 = vpack.c.b16 %v358, %v357
    %v373 = vpack.c.b16 %v360, %v359
    %v374 = vpack.c.b16 %v362, %v361
    %v375 = vpack.c.b16 %v364, %v363
    %v376 = vpack.c.b16 %v366, %v365
    %v377 = vpack.c.b16 %v368, %v367
    %v378 = vpack.c.b16 %v370, %v369
    %387 = vmatpush.bf16.msra.mxu0 %v378
    %388 = vmatpush.bf16.msra.mxu0 %v377
    %389 = vmatpush.bf16.msra.mxu0 %v376
    %390 = vmatpush.bf16.msra.mxu0 %v375
    %391 = vmatpush.bf16.msra.mxu0 %v374
    %392 = vmatpush.bf16.msra.mxu0 %v373
    %393 = vmatpush.bf16.msra.mxu0 %v372
    %394 = vmatpush.bf16.msra.mxu0 %v371
    %395 = vmatmul.bf16.gmra.mxu0 %v335
    %v396 = vpop.f32.mrf.mxu0
    %v397 = vadd.f32 %v318, %v396
    %v398 = vpop.f32.mrf.mxu0
    %v399 = vadd.f32 %v320, %v398
    %400 = vmatmul.bf16.gmra.mxu0 %v336
    %v401 = vpop.f32.mrf.mxu0
    %v402 = vadd.f32 %v323, %v401
    %v403 = vpop.f32.mrf.mxu0
    %v404 = vadd.f32 %v325, %v403
    %405 = vdwg.mxu0
    %v406 = vld [vmem:[#allocation2] sm:$0xe]
    %v407 = vld [vmem:[#allocation2 + $0xc] sm:$0xe]
    %vm412 = vcmask 1042432
    %vm413 = vcmask 1046532
    %vm414 = vmor %vm412, %vm413
    %v415 = vrot.slane %v406, 5
    %v416 = vrot.slane %v415, 4
    %v417 = vrot.slane %v163, 5
    %v418 = vsel %vm414, %v416, %v417
    %v419 = vrot.slane %v417, 4
    %v420 = vrot.slane %v182, 5
    %v421 = vsel %vm414, %v419, %v420
    %v422 = vrot.slane %v407, 5
    %v423 = vrot.slane %v422, 4
    %v424 = vrot.slane %v165, 5
    %v425 = vsel %vm414, %v423, %v424
    %v426 = vrot.slane %v424, 4
    %v427 = vrot.slane %v183, 5
    %v428 = vsel %vm414, %v426, %v427
    %s429 = scalar_lea.vmem [#allocation9], 128
    %v430 = vld [vmem:[%s429] sm:$0xf]
    %v431 = vld [vmem:[%s429 + $0x4] sm:$0xf]
    %v432 = vld [vmem:[%s429 + $0x8] sm:$0xf]
    %v433 = vld [vmem:[%s429 + $0xc] sm:$0xf]
    %v434 = vld [vmem:[%s429 + $0x10] sm:$0xf]
    %v435 = vld [vmem:[%s429 + $0x14] sm:$0xf]
    %v436 = vld [vmem:[%s429 + $0x18] sm:$0xf]
    %v437 = vld [vmem:[%s429 + $0x1c] sm:$0xf]
    %v438 = vld [vmem:[%s429 + $0x20] sm:$0xf]
    %v439 = vld [vmem:[%s429 + $0x24] sm:$0xf]
    %v440 = vld [vmem:[%s429 + $0x28] sm:$0xf]
    %v441 = vld [vmem:[%s429 + $0x2c] sm:$0xf]
    %v442 = vld [vmem:[%s429 + $0x30] sm:$0xf]
    %v443 = vld [vmem:[%s429 + $0x34] sm:$0xf]
    %v444 = vld [vmem:[%s429 + $0x38] sm:$0xf]
    %v445 = vld [vmem:[%s429 + $0x3c] sm:$0xf]
    %v446 = vunpack.c.l.b16 %v418
    %v447 = vunpack.c.l.b16 %v421
    %v448 = vunpack.c.l.b16 %v425
    %v449 = vunpack.c.l.b16 %v428
    %v450 = vpack.c.b16 %v447, %v446
    %v451 = vpack.c.b16 %v449, %v448
    %v470 = vunpack.c.l.b16 %v430
    %v471 = vunpack.c.l.b16 %v431
    %v472 = vunpack.c.l.b16 %v432
    %v473 = vunpack.c.l.b16 %v433
    %v474 = vunpack.c.l.b16 %v434
    %v475 = vunpack.c.l.b16 %v435
    %v476 = vunpack.c.l.b16 %v436
    %v477 = vunpack.c.l.b16 %v437
    %v478 = vunpack.c.l.b16 %v438
    %v479 = vunpack.c.l.b16 %v439
    %v480 = vunpack.c.l.b16 %v440
    %v481 = vunpack.c.l.b16 %v441
    %v482 = vunpack.c.l.b16 %v442
    %v483 = vunpack.c.l.b16 %v443
    %v484 = vunpack.c.l.b16 %v444
    %v485 = vunpack.c.l.b16 %v445
    %v486 = vpack.c.b16 %v471, %v470
    %v487 = vpack.c.b16 %v473, %v472
    %v488 = vpack.c.b16 %v475, %v474
    %v489 = vpack.c.b16 %v477, %v476
    %v490 = vpack.c.b16 %v479, %v478
    %v491 = vpack.c.b16 %v481, %v480
    %v492 = vpack.c.b16 %v483, %v482
    %v493 = vpack.c.b16 %v485, %v484
    %502 = vmatpush.bf16.msra.mxu0 %v493
    %503 = vmatpush.bf16.msra.mxu0 %v492
    %504 = vmatpush.bf16.msra.mxu0 %v491
    %505 = vmatpush.bf16.msra.mxu0 %v490
    %506 = vmatpush.bf16.msra.mxu0 %v489
    %507 = vmatpush.bf16.msra.mxu0 %v488
    %508 = vmatpush.bf16.msra.mxu0 %v487
    %509 = vmatpush.bf16.msra.mxu0 %v486
    %510 = vmatmul.bf16.gmra.mxu0 %v450
    %v511 = vpop.f32.mrf.mxu0
    %v512 = vadd.f32 0.0, %v511
    %v513 = vpop.f32.mrf.mxu0
    %v514 = vadd.f32 0.0, %v513
    %515 = vmatmul.bf16.gmra.mxu0 %v451
    %v516 = vpop.f32.mrf.mxu0
    %v517 = vadd.f32 0.0, %v516
    %v518 = vpop.f32.mrf.mxu0
    %v519 = vadd.f32 0.0, %v518
    %520 = vdwg.mxu0
    %v521 = vadd.f32 %v397, %v512
    %v522 = vadd.f32 %v399, %v514
    %v523 = vadd.f32 %v402, %v517
    %v524 = vadd.f32 %v404, %v519
    %v525 = vmul.f32 %v521, %v158
    %v526 = vmul.f32 %v522, %v159
    %v527 = vmul.f32 %v523, %v160
    %v528 = vmul.f32 %v524, %v161
    %v529 = vpack.c.bf16 %v525, %v525
    %v530 = vpack.c.bf16 %v526, %v526
    %v531 = vpack.c.bf16 %v527, %v527
    %v532 = vpack.c.bf16 %v528, %v528
    %v534 = vshrl.u32 %v529, 16
    %v536 = vrot.slane %v534, 7
    %v537 = vshll.u32 %v529, 16
    %v539 = vor.u32 %v536, %v537
    %v540 = vrot.slane %v536, 4
    %v542 = vshrl.u32 %v530, 16
    %v544 = vrot.slane %v542, 7
    %v545 = vshll.u32 %v530, 16
    %v547 = vor.u32 %v544, %v545
    %v548 = vsel %vm101, %v540, %v547
    %v549 = vrot.slane %v544, 4
    %v551 = vshrl.u32 %v531, 16
    %v553 = vrot.slane %v551, 7
    %v554 = vshll.u32 %v531, 16
    %v556 = vor.u32 %v553, %v554
    %v557 = vrot.slane %v553, 4
    %v559 = vshrl.u32 %v532, 16
    %v561 = vrot.slane %v559, 7
    %v562 = vshll.u32 %v532, 16
    %v564 = vor.u32 %v561, %v562
    %v565 = vsel %vm101, %v557, %v564
    %v566 = vrot.slane %v561, 4
    %v573 = vld [vmem:[#allocation3] sm:$0xf]
    %v574 = vsel %vm143, %v539, %v573
    %575 = vst [vmem:[#allocation3] sm:$0xf] %v574
    %576 = vst [vmem:[#allocation3 + $0x4] sm:$0xf] %v548
    %v577 = vld [vmem:[#allocation3 + $0x8] sm:$0x1]
    %v578 = vsel %vm65, %v549, %v577
    %579 = vst [vmem:[#allocation3 + $0x8] sm:$0x1] %v578
    %v580 = vld [vmem:[#allocation3 + $0xc] sm:$0xf]
    %v581 = vsel %vm143, %v556, %v580
    %582 = vst [vmem:[#allocation3 + $0xc] sm:$0xf] %v581
    %583 = vst [vmem:[#allocation3 + $0x10] sm:$0xf] %v565
    %v584 = vld [vmem:[#allocation3 + $0x14] sm:$0x1]
    %v585 = vsel %vm65, %v566, %v584
    %586 = vst [vmem:[#allocation3 + $0x14] sm:$0x1] %v585
    %v587 = vld [vmem:[#allocation3] sm:$0xf]
    %v588 = vld [vmem:[#allocation3 + $0x4] sm:$0xf]
    %v589 = vld [vmem:[#allocation3 + $0xc] sm:$0xf]
    %v590 = vld [vmem:[#allocation3 + $0x10] sm:$0xf]
    %s591 = scalar_lea.vmem [#allocation9], 192
    %v592 = vld [vmem:[%s591] sm:$0xf]
    %v593 = vld [vmem:[%s591 + $0x4] sm:$0xf]
    %v594 = vld [vmem:[%s591 + $0x8] sm:$0xf]
    %v595 = vld [vmem:[%s591 + $0xc] sm:$0xf]
    %v596 = vld [vmem:[%s591 + $0x10] sm:$0xf]
    %v597 = vld [vmem:[%s591 + $0x14] sm:$0xf]
    %v598 = vld [vmem:[%s591 + $0x18] sm:$0xf]
    %v599 = vld [vmem:[%s591 + $0x1c] sm:$0xf]
    %v600 = vld [vmem:[%s591 + $0x20] sm:$0xf]
    %v601 = vld [vmem:[%s591 + $0x24] sm:$0xf]
    %v602 = vld [vmem:[%s591 + $0x28] sm:$0xf]
    %v603 = vld [vmem:[%s591 + $0x2c] sm:$0xf]
    %v604 = vld [vmem:[%s591 + $0x30] sm:$0xf]
    %v605 = vld [vmem:[%s591 + $0x34] sm:$0xf]
    %v606 = vld [vmem:[%s591 + $0x38] sm:$0xf]
    %v607 = vld [vmem:[%s591 + $0x3c] sm:$0xf]
    %v608 = vld [vmem:[#allocation3 + $0x8] sm:$0x1]
    %v609 = vld [vmem:[#allocation3 + $0x14] sm:$0x1]
    %v611 = vshrl.u32 %v587, 16
    %v613 = vrot.slane %v611, 4
    %v614 = vshll.u32 %v587, 16
    %v616 = vrot.slane %v614, 5
    %v617 = vor.u32 %v613, %v616
    %v618 = vrot.slane %v617, 4
    %v620 = vshll.u32 %v588, 16
    %v622 = vrot.slane %v620, 5
    %v623 = vsel %vm186, %v618, %v622
    %v624 = vshrl.u32 %v588, 16
    %v626 = vrot.slane %v624, 4
    %v627 = vor.u32 %v626, %v622
    %v628 = vrot.slane %v627, 4
    %v630 = vshll.u32 %v608, 16
    %v632 = vrot.slane %v630, 5
    %v633 = vsel %vm186, %v628, %v632
    %v635 = vshrl.u32 %v589, 16
    %v637 = vrot.slane %v635, 4
    %v638 = vshll.u32 %v589, 16
    %v640 = vrot.slane %v638, 5
    %v641 = vor.u32 %v637, %v640
    %v642 = vrot.slane %v641, 4
    %v644 = vshll.u32 %v590, 16
    %v646 = vrot.slane %v644, 5
    %v647 = vsel %vm186, %v642, %v646
    %v648 = vshrl.u32 %v590, 16
    %v650 = vrot.slane %v648, 4
    %v651 = vor.u32 %v650, %v646
    %v652 = vrot.slane %v651, 4
    %v654 = vshll.u32 %v609, 16
    %v656 = vrot.slane %v654, 5
    %v657 = vsel %vm186, %v652, %v656
    %s658 = scalar_lea.vmem [#allocation9], 256
    %v659 = vld [vmem:[%s658] sm:$0xf]
    %v660 = vld [vmem:[%s658 + $0x4] sm:$0xf]
    %v661 = vld [vmem:[%s658 + $0x8] sm:$0xf]
    %v662 = vld [vmem:[%s658 + $0xc] sm:$0xf]
    %v663 = vld [vmem:[%s658 + $0x10] sm:$0xf]
    %v664 = vld [vmem:[%s658 + $0x14] sm:$0xf]
    %v665 = vld [vmem:[%s658 + $0x18] sm:$0xf]
    %v666 = vld [vmem:[%s658 + $0x1c] sm:$0xf]
    %v667 = vld [vmem:[%s658 + $0x20] sm:$0xf]
    %v668 = vld [vmem:[%s658 + $0x24] sm:$0xf]
    %v669 = vld [vmem:[%s658 + $0x28] sm:$0xf]
    %v670 = vld [vmem:[%s658 + $0x2c] sm:$0xf]
    %v671 = vld [vmem:[%s658 + $0x30] sm:$0xf]
    %v672 = vld [vmem:[%s658 + $0x34] sm:$0xf]
    %v673 = vld [vmem:[%s658 + $0x38] sm:$0xf]
    %v674 = vld [vmem:[%s658 + $0x3c] sm:$0xf]
    %v675 = vunpack.c.l.b16 %v623
    %v676 = vunpack.c.l.b16 %v633
    %v677 = vunpack.c.l.b16 %v647
    %v678 = vunpack.c.l.b16 %v657
    %v679 = vpack.c.b16 %v676, %v675
    %v680 = vpack.c.b16 %v678, %v677
    %v699 = vunpack.c.l.b16 %v659
    %v700 = vunpack.c.l.b16 %v660
    %v701 = vunpack.c.l.b16 %v661
    %v702 = vunpack.c.l.b16 %v662
    %v703 = vunpack.c.l.b16 %v663
    %v704 = vunpack.c.l.b16 %v664
    %v705 = vunpack.c.l.b16 %v665
    %v706 = vunpack.c.l.b16 %v666
    %v707 = vunpack.c.l.b16 %v667
    %v708 = vunpack.c.l.b16 %v668
    %v709 = vunpack.c.l.b16 %v669
    %v710 = vunpack.c.l.b16 %v670
    %v711 = vunpack.c.l.b16 %v671
    %v712 = vunpack.c.l.b16 %v672
    %v713 = vunpack.c.l.b16 %v673
    %v714 = vunpack.c.l.b16 %v674
    %v715 = vpack.c.b16 %v700, %v699
    %v716 = vpack.c.b16 %v702, %v701
    %v717 = vpack.c.b16 %v704, %v703
    %v718 = vpack.c.b16 %v706, %v705
    %v719 = vpack.c.b16 %v708, %v707
    %v720 = vpack.c.b16 %v710, %v709
    %v721 = vpack.c.b16 %v712, %v711
    %v722 = vpack.c.b16 %v714, %v713
    %731 = vmatpush.bf16.msra.mxu0 %v722
    %732 = vmatpush.bf16.msra.mxu0 %v721
    %733 = vmatpush.bf16.msra.mxu0 %v720
    %734 = vmatpush.bf16.msra.mxu0 %v719
    %735 = vmatpush.bf16.msra.mxu0 %v718
    %736 = vmatpush.bf16.msra.mxu0 %v717
    %737 = vmatpush.bf16.msra.mxu0 %v716
    %738 = vmatpush.bf16.msra.mxu0 %v715
    %739 = vmatmul.bf16.gmra.mxu0 %v679
    %v740 = vpop.f32.mrf.mxu0
    %v741 = vadd.f32 0.0, %v740
    %v742 = vpop.f32.mrf.mxu0
    %v743 = vadd.f32 0.0, %v742
    %744 = vmatmul.bf16.gmra.mxu0 %v680
    %v745 = vpop.f32.mrf.mxu0
    %v746 = vadd.f32 0.0, %v745
    %v747 = vpop.f32.mrf.mxu0
    %v748 = vadd.f32 0.0, %v747
    %749 = vdwg.mxu0
    %v754 = vunpack.c.l.b16 %v587
    %v755 = vunpack.c.l.b16 %v588
    %v756 = vunpack.c.l.b16 %v589
    %v757 = vunpack.c.l.b16 %v590
    %v758 = vpack.c.b16 %v755, %v754
    %v759 = vpack.c.b16 %v757, %v756
    %v778 = vunpack.c.l.b16 %v592
    %v779 = vunpack.c.l.b16 %v593
    %v780 = vunpack.c.l.b16 %v594
    %v781 = vunpack.c.l.b16 %v595
    %v782 = vunpack.c.l.b16 %v596
    %v783 = vunpack.c.l.b16 %v597
    %v784 = vunpack.c.l.b16 %v598
    %v785 = vunpack.c.l.b16 %v599
    %v786 = vunpack.c.l.b16 %v600
    %v787 = vunpack.c.l.b16 %v601
    %v788 = vunpack.c.l.b16 %v602
    %v789 = vunpack.c.l.b16 %v603
    %v790 = vunpack.c.l.b16 %v604
    %v791 = vunpack.c.l.b16 %v605
    %v792 = vunpack.c.l.b16 %v606
    %v793 = vunpack.c.l.b16 %v607
    %v794 = vpack.c.b16 %v779, %v778
    %v795 = vpack.c.b16 %v781, %v780
    %v796 = vpack.c.b16 %v783, %v782
    %v797 = vpack.c.b16 %v785, %v784
    %v798 = vpack.c.b16 %v787, %v786
    %v799 = vpack.c.b16 %v789, %v788
    %v800 = vpack.c.b16 %v791, %v790
    %v801 = vpack.c.b16 %v793, %v792
    %810 = vmatpush.bf16.msra.mxu0 %v801
    %811 = vmatpush.bf16.msra.mxu0 %v800
    %812 = vmatpush.bf16.msra.mxu0 %v799
    %813 = vmatpush.bf16.msra.mxu0 %v798
    %814 = vmatpush.bf16.msra.mxu0 %v797
    %815 = vmatpush.bf16.msra.mxu0 %v796
    %816 = vmatpush.bf16.msra.mxu0 %v795
    %817 = vmatpush.bf16.msra.mxu0 %v794
    %818 = vmatmul.bf16.gmra.mxu0 %v758
    %v819 = vpop.f32.mrf.mxu0
    %v820 = vadd.f32 %v741, %v819
    %v821 = vpop.f32.mrf.mxu0
    %v822 = vadd.f32 %v743, %v821
    %823 = vmatmul.bf16.gmra.mxu0 %v759
    %v824 = vpop.f32.mrf.mxu0
    %v825 = vadd.f32 %v746, %v824
    %v826 = vpop.f32.mrf.mxu0
    %v827 = vadd.f32 %v748, %v826
    %828 = vdwg.mxu0
    %v829 = vld [vmem:[#allocation3] sm:$0xe]
    %v830 = vld [vmem:[#allocation3 + $0xc] sm:$0xe]
    %v835 = vrot.slane %v829, 5
    %v836 = vrot.slane %v835, 4
    %v837 = vrot.slane %v588, 5
    %v838 = vsel %vm414, %v836, %v837
    %v839 = vrot.slane %v837, 4
    %v840 = vrot.slane %v608, 5
    %v841 = vsel %vm414, %v839, %v840
    %v842 = vrot.slane %v830, 5
    %v843 = vrot.slane %v842, 4
    %v844 = vrot.slane %v590, 5
    %v845 = vsel %vm414, %v843, %v844
    %v846 = vrot.slane %v844, 4
    %v847 = vrot.slane %v609, 5
    %v848 = vsel %vm414, %v846, %v847
    %s849 = scalar_lea.vmem [#allocation9], 320
    %v850 = vld [vmem:[%s849] sm:$0xf]
    %v851 = vld [vmem:[%s849 + $0x4] sm:$0xf]
    %v852 = vld [vmem:[%s849 + $0x8] sm:$0xf]
    %v853 = vld [vmem:[%s849 + $0xc] sm:$0xf]
    %v854 = vld [vmem:[%s849 + $0x10] sm:$0xf]
    %v855 = vld [vmem:[%s849 + $0x14] sm:$0xf]
    %v856 = vld [vmem:[%s849 + $0x18] sm:$0xf]
    %v857 = vld [vmem:[%s849 + $0x1c] sm:$0xf]
    %v858 = vld [vmem:[%s849 + $0x20] sm:$0xf]
    %v859 = vld [vmem:[%s849 + $0x24] sm:$0xf]
    %v860 = vld [vmem:[%s849 + $0x28] sm:$0xf]
    %v861 = vld [vmem:[%s849 + $0x2c] sm:$0xf]
    %v862 = vld [vmem:[%s849 + $0x30] sm:$0xf]
    %v863 = vld [vmem:[%s849 + $0x34] sm:$0xf]
    %v864 = vld [vmem:[%s849 + $0x38] sm:$0xf]
    %v865 = vld [vmem:[%s849 + $0x3c] sm:$0xf]
    %v866 = vunpack.c.l.b16 %v838
    %v867 = vunpack.c.l.b16 %v841
    %v868 = vunpack.c.l.b16 %v845
    %v869 = vunpack.c.l.b16 %v848
    %v870 = vpack.c.b16 %v867, %v866
    %v871 = vpack.c.b16 %v869, %v868
    %v890 = vunpack.c.l.b16 %v850
    %v891 = vunpack.c.l.b16 %v851
    %v892 = vunpack.c.l.b16 %v852
    %v893 = vunpack.c.l.b16 %v853
    %v894 = vunpack.c.l.b16 %v854
    %v895 = vunpack.c.l.b16 %v855
    %v896 = vunpack.c.l.b16 %v856
    %v897 = vunpack.c.l.b16 %v857
    %v898 = vunpack.c.l.b16 %v858
    %v899 = vunpack.c.l.b16 %v859
    %v900 = vunpack.c.l.b16 %v860
    %v901 = vunpack.c.l.b16 %v861
    %v902 = vunpack.c.l.b16 %v862
    %v903 = vunpack.c.l.b16 %v863
    %v904 = vunpack.c.l.b16 %v864
    %v905 = vunpack.c.l.b16 %v865
    %v906 = vpack.c.b16 %v891, %v890
    %v907 = vpack.c.b16 %v893, %v892
    %v908 = vpack.c.b16 %v895, %v894
    %v909 = vpack.c.b16 %v897, %v896
    %v910 = vpack.c.b16 %v899, %v898
    %v911 = vpack.c.b16 %v901, %v900
    %v912 = vpack.c.b16 %v903, %v902
    %v913 = vpack.c.b16 %v905, %v904
    %922 = vmatpush.bf16.msra.mxu0 %v913
    %923 = vmatpush.bf16.msra.mxu0 %v912
    %924 = vmatpush.bf16.msra.mxu0 %v911
    %925 = vmatpush.bf16.msra.mxu0 %v910
    %926 = vmatpush.bf16.msra.mxu0 %v909
    %927 = vmatpush.bf16.msra.mxu0 %v908
    %928 = vmatpush.bf16.msra.mxu0 %v907
    %929 = vmatpush.bf16.msra.mxu0 %v906
    %930 = vmatmul.bf16.gmra.mxu0 %v870
    %v931 = vpop.f32.mrf.mxu0
    %v932 = vadd.f32 0.0, %v931
    %v933 = vpop.f32.mrf.mxu0
    %v934 = vadd.f32 0.0, %v933
    %935 = vmatmul.bf16.gmra.mxu0 %v871
    %v936 = vpop.f32.mrf.mxu0
    %v937 = vadd.f32 0.0, %v936
    %v938 = vpop.f32.mrf.mxu0
    %v939 = vadd.f32 0.0, %v938
    %940 = vdwg.mxu0
    %v941 = vadd.f32 %v820, %v932
    %v942 = vadd.f32 %v822, %v934
    %v943 = vadd.f32 %v825, %v937
    %v944 = vadd.f32 %v827, %v939
    %945 = vst [vmem:[#allocation10] sm:$0xff] %v941
    %946 = vst [vmem:[#allocation10 + $0x8] sm:$0xff] %v942
    %947 = vst [vmem:[#allocation10 + $0x10] sm:$0xff] %v943
    %948 = vst [vmem:[#allocation10 + $0x18] sm:$0xff] %v944
    // Predicated region
    $region26: #{tpu_custom_call.1} parent=1 // pred_check
      _
    $region27: #{tpu_custom_call.1} parent=1 // pred_check_branch
      %950 = sbr.rel (0) target = $region29
    $region28: #{tpu_custom_call.1} parent=1 // pred_region
      %952 = vsyncadd [#allocation6], 0
      %s953 = sshll.u32 [#allocation10], 4
      %s954 = int_to_ptr.vmem [resolvable:$true] %s953
      %s955 = sshll.u32 %s3, 4
      %s956 = int_to_ptr.hbm [resolvable:$true] %s955
      %961 = dma.vmem_to_hbm [thread:$0]  %s954, 512, %s956, [#allocation6], 128, 128, 8
    $region29: #{tpu_custom_call.1} parent=1 // pred_fallthru
      _
    // Predicated region
    $region30: #{tpu_custom_call.1} parent=1 // pred_check
      _
    $region31: #{tpu_custom_call.1} parent=1 // pred_check_branch
      %963 = sbr.rel (0) target = $region33
    $region32: #{tpu_custom_call.1} parent=1 // pred_region
      %965 = dma.done [#allocation6], 512
    $region33: #{tpu_custom_call.1} parent=1 // pred_fallthru
      _
    %966 = vsyncpa [#allocation5], 1
    %967 = vsyncpa [#allocation8], 1
    %968 = vsyncpa [#allocation6], 1

</llo_original>
